<compile_context>
chip_gen: v6e
topology: v6e:2x2x1
jax: 0.10.0
libtpu: 0.0.40
codegen_flags: <defaults>
</compile_context>

<pallas_src>
import functools

import jax
import jax.numpy as jnp
import numpy as np
from jax.experimental import pallas as pl
from jax.experimental.pallas import tpu as pltpu


# ----------------------------- fused Pallas kernel -----------------------------

def _csnet_fused_kernel(x_ref, slab_ref, o_ref, *, T, C, Kmax, pad_max, TPAD, Bblk):
    """Bblk batch elements packed along lanes: folded spatial conv+BN ->
    depthwise temporal convs (BN scale + Gram 1/(T-1) pre-folded into taps) ->
    per-sample Gram matrix, entirely in VMEM.

    x_ref   : (1, C, Bblk*TPAD)  each sample owns a TPAD-wide lane window,
                                 real data in cols [0, T) of its window
    slab_ref: (F, C+1+Kmax+1)    [ Wp | bp | wtp | ttp ]
    o_ref   : (1, Bblk, F, F)    per-sample Gram matrices (already /(T-1))
    """
    x = x_ref[0]                                                  # (C, LANES)
    LANES = x.shape[-1]

    slab = slab_ref[...]
    F = slab.shape[0]
    Wp = slab[:, :C]                                              # (F, C)
    bp = slab[:, C:C + 1]                                         # (F, 1)
    wtp = slab[:, C + 1:C + 1 + Kmax]                             # (F, Kmax)
    ttp = slab[:, C + 1 + Kmax:C + 2 + Kmax]                      # (F, 1)

    # valid-time mask, periodic per TPAD-wide sample window
    col = jax.lax.broadcasted_iota(jnp.int32, (1, LANES), 1)
    mask = ((col % TPAD) < T).astype(jnp.float32)

    # --- folded spatial path: one MXU matmul + affine -------------------------
    xs = (jnp.dot(Wp, x, preferred_element_type=jnp.float32) + bp) * mask

    # --- depthwise temporal conv, all filter sizes in one uniform tap loop ----
    # out[r, p] = sum_k wtp[r, k] * xs[r, p - pad_max + k]; lane rolls hit the
    # XLU and the circular wrap only ever lands in masked-zero gutter columns
    # (T + pad_max <= TPAD, asserted by the wrapper).
    acc = jnp.zeros((F, LANES), jnp.float32)
    for k in range(Kmax):                                         # static unroll
        shift = (pad_max - k) % LANES
        shifted = xs if shift == 0 else pltpu.roll(xs, shift=shift, axis=1)
        acc = acc + wtp[:, k:k + 1] * shifted
    xt = (acc + ttp) * mask                                       # (F, LANES), pre-scaled

    # --- per-sample Gram: contract the time window of both operands -----------
    for j in range(Bblk):                                         # static unroll
        xw = xt[:, j * TPAD:(j + 1) * TPAD]                       # (F, TPAD)
        g = jax.lax.dot_general(xw, xw, (((1,), (1,)), ((), ())),
                                preferred_element_type=jnp.float32)
        o_ref[0, j] = g.astype(o_ref.dtype)


# ----------------------------- host-side packing -----------------------------

def _pack_kernel_params(p, *, SM, TE, T):
    """Fold everything foldable and pack per-row params into one (F, C+Kmax+2) slab."""
    filters = p["filters"]
    nf = len(filters)
    F = nf * SM * TE
    Kmax = max(filters)
    # xt channel order matches PyTorch stack+reshape: r = f*(SM*TE) + m*TE + e
    m_idx = np.tile(np.repeat(np.arange(SM), TE), nf)             # (F,)
    w2r = p["w2"][m_idx]                                          # (F, SE)
    s2r = p["s2"][m_idx]                                          # (F, 1)
    t2r = p["t2"][m_idx]                                          # (F, 1)

    # fold: both spatial convs + conv biases + spatial BN -> one affine map
    Wp = s2r * (w2r @ p["w1"])                                    # (F, C)
    bp = s2r * (w2r @ p["b1"]) + t2r                              # (F, 1)

    # centre-pad taps to Kmax; fold temporal BN scale and Gram 1/(T-1) into them
    r = 1.0 / np.sqrt(T - 1.0)
    wt_all = jnp.zeros((nf, SM, TE, Kmax), jnp.float32)
    for i, (K, w) in enumerate(zip(filters, p["wt"])):
        off = (Kmax - K) // 2
        wt_all = wt_all.at[i, :, :, off:off + K].set(w)
    st_all = jnp.stack(p["st"]).reshape(F, 1)
    tt_all = jnp.stack(p["tt"]).reshape(F, 1)
    wtp = (r * st_all) * wt_all.reshape(F, Kmax)                  # (F, Kmax)
    ttp = r * tt_all                                              # (F, 1)

    slab = jnp.concatenate([Wp, bp, wtp, ttp], axis=1).astype(jnp.float32)
    return slab                                                   # (F, C+Kmax+2)


# ----------------------------- full forward -----------------------------

def csnet_smt_forward(x, params, *, TE):
    B, C, T = x.shape
    filters = params["filters"]
    # PyTorch Conv2d with padding=(0, K//2) only preserves length T for odd K.
    assert all(K % 2 == 1 for K in filters), "filter sizes must be odd"
    SM = params["w2"].shape[0]
    nf = len(filters)
    F = nf * SM * TE
    Kmax = max(filters)
    pad_max = Kmax // 2
    TPAD = max(128, pl.cdiv(T + pad_max, 128) * 128)              # lane-dense window
    assert T + pad_max <= TPAD

    slab = _pack_kernel_params(params, SM=SM, TE=TE, T=T)

    # batch blocking: keep >= 2 grid steps (v7x megacore) and pack Bblk samples
    # along the lane axis within a step so one matmul / tap loop serves them all.
    Bout = 2 if B >= 2 else 1
    Bblk = pl.cdiv(B, Bout)
    Bpad = Bout * Bblk
    xp = jnp.pad(x, ((0, Bpad - B), (0, 0), (0, TPAD - T)))       # (Bpad, C, TPAD)
    xpacked = (xp.reshape(Bout, Bblk, C, TPAD)
                 .transpose(0, 2, 1, 3)
                 .reshape(Bout, C, Bblk * TPAD))

    kern = functools.partial(_csnet_fused_kernel, T=T, C=C, Kmax=Kmax,
                             pad_max=pad_max, TPAD=TPAD, Bblk=Bblk)
    gram = pl.pallas_call(
        kern,
        out_shape=jax.ShapeDtypeStruct((Bout, Bblk, F, F), jnp.float32),
        grid=(Bout,),
        in_specs=[
            pl.BlockSpec((1, C, Bblk * TPAD), lambda b: (b, 0, 0)),
            pl.BlockSpec((F, slab.shape[1]), lambda b: (0, 0)),
        ],
        out_specs=pl.BlockSpec((1, Bblk, F, F), lambda b: (b, 0, 0, 0)),
        compiler_params=pltpu.CompilerParams(
            dimension_semantics=("parallel",)),
    )(xpacked, slab)

    xb = gram.reshape(Bpad, F, F)[:B]                             # (B, F, F)

    # Cholesky + torch's try/except fallback, emulated with a NaN check.
    # TODO(synk): the original try/except LinAlgError control flow has no exact
    # Pallas/JAX equivalent; emulated via NaN detection + regularized retry.
    L = jnp.linalg.cholesky(xb)
    bad = jnp.any(jnp.isnan(L))
    xb_reg = 0.5 * (xb + jnp.swapaxes(xb, 1, 2)) + 1e-3 * jnp.eye(F, dtype=xb.dtype)
    L = jnp.where(bad, jnp.linalg.cholesky(xb_reg), L)

    # tangent-space extraction: log(diag) ++ strict-lower (row-major)
    diag = jnp.diagonal(L, axis1=1, axis2=2)                      # (B, F)
    rows, cols = jnp.tril_indices(F, -1)                          # row-major order
    lower = L[:, rows, cols]                                      # (B, F(F-1)/2)
    tangent = jnp.concatenate([jnp.log(diag), lower], axis=1)     # (B, D)

    # final linear layer: tiny (300 x 4) -> plain XLA, no kernel-launch overhead
    return tangent @ params["wfc"] + params["bfc"]                # (B, n_class)


# ----------------------------- parameter init -----------------------------

def init_params(key, *, n_chans, n_class, SE, SM, TE, filters, eps=1e-5):
    keys = iter(jax.random.split(key, 32))
    nk = lambda: next(keys)
    p = {"filters": tuple(filters)}

    # spatial_convs[0]: Conv2d(1, SE, (n_chans, 1))
    p["w1"] = 0.3 * jax.random.normal(nk(), (SE, n_chans), jnp.float32)
    p["b1"] = 0.1 * jax.random.normal(nk(), (SE, 1), jnp.float32)

    # spatial_convs[1]: Conv2d(1, SM, (SE, 1)) + BatchNorm2d(SM)  (inference)
    w2 = 0.3 * jax.random.normal(nk(), (SM, SE), jnp.float32)
    b2 = 0.1 * jax.random.normal(nk(), (SM,), jnp.float32)
    g = 1.0 + 0.1 * jax.random.normal(nk(), (SM,), jnp.float32)
    beta = 0.1 * jax.random.normal(nk(), (SM,), jnp.float32)
    mean = 0.1 * jax.random.normal(nk(), (SM,), jnp.float32)
    var = 0.5 + jax.random.uniform(nk(), (SM,), jnp.float32)
    scale = g / jnp.sqrt(var + eps)
    p["w2"] = w2
    p["s2"] = scale.reshape(SM, 1)
    p["t2"] = (beta - mean * scale + scale * b2).reshape(SM, 1)

    # temporal_convs: grouped Conv2d(SM, TE*SM, (1,K), groups=SM) + BN(TE*SM)
    p["wt"], p["st"], p["tt"] = [], [], []
    for K in filters:
        w = 0.3 * jax.random.normal(nk(), (SM, TE, K), jnp.float32)
        b = 0.1 * jax.random.normal(nk(), (SM, TE), jnp.float32)
        g = 1.0 + 0.1 * jax.random.normal(nk(), (SM, TE), jnp.float32)
        beta = 0.1 * jax.random.normal(nk(), (SM, TE), jnp.float32)
        mean = 0.1 * jax.random.normal(nk(), (SM, TE), jnp.float32)
        var = 0.5 + jax.random.uniform(nk(), (SM, TE), jnp.float32)
        scale = g / jnp.sqrt(var + eps)
        p["wt"].append(w)
        p["st"].append(scale)
        p["tt"].append(beta - mean * scale + scale * b)

    # fc: Linear((F+1)*F/2, n_class), stored transposed as (D, n_class)
    F = len(filters) * TE * SM
    D = (F + 1) * F // 2
    p["wfc"] = 0.05 * jax.random.normal(nk(), (D, n_class), jnp.float32)
    p["bfc"] = 0.05 * jax.random.normal(nk(), (1, n_class), jnp.float32)
    return p


# ----------------------------- pure-JAX reference -----------------------------

def reference_forward(x, p, TE):
    B, C, T = x.shape
    y1 = jnp.einsum("oc,bct->bot", p["w1"], x) + p["b1"][None]
    y2 = jnp.einsum("mo,bot->bmt", p["w2"], y1)
    y2 = y2 * p["s2"][None] + p["t2"][None]
    SM = y2.shape[1]
    parts = []
    for (K, w, s, t) in zip(p["filters"], p["wt"], p["st"], p["tt"]):
        pad = K // 2
        xp = jnp.pad(y2, ((0, 0), (0, 0), (pad, pad)))
        out = jnp.zeros((B, SM, TE, T), jnp.float32)
        for k in range(K):
            out = out + w[None, :, :, k, None] * xp[:, :, None, k:k + T]
        out = out * s[None, :, :, None] + t[None, :, :, None]
        parts.append(out.reshape(B, SM * TE, T))
    xt = jnp.concatenate(parts, 1)
    xb = jnp.einsum("bft,bgt->bfg", xt, xt) / (T - 1)
    F = xb.shape[-1]
    L = jnp.linalg.cholesky(xb)
    bad = jnp.any(jnp.isnan(L))
    xb_reg = 0.5 * (xb + jnp.swapaxes(xb, 1, 2)) + 1e-3 * jnp.eye(F, dtype=xb.dtype)
    L = jnp.where(bad, jnp.linalg.cholesky(xb_reg), L)
    diag = jnp.diagonal(L, axis1=1, axis2=2)
    rows, cols = jnp.tril_indices(F, -1)
    lower = L[:, rows, cols]
    tangent = jnp.concatenate([jnp.log(diag), lower], axis=1)
    return tangent @ p["wfc"] + p["bfc"]


# ----------------------------- main -----------------------------

if __name__ == "__main__":
    # Small shapes consistent with CSNet_SMT(n_chans=8, n_class=4,
    # spatial_expansion=16, spatial_merge=4, filters=[3,5,7], temporal_expansion=2)
    B, C, T = 4, 8, 64
    SE, SM, TE = 16, 4, 2
    filters = [3, 5, 7]
    n_class = 4

    key = jax.random.PRNGKey(0)
    kx, kp = jax.random.split(key)
    x = jax.random.normal(kx, (B, C, T), jnp.float32)
    params = init_params(kp, n_chans=C, n_class=n_class, SE=SE, SM=SM, TE=TE,
                         filters=filters)

    out = jax.block_until_ready(csnet_smt_forward(x, params, TE=TE))
    ref = jax.block_until_ready(reference_forward(x, params, TE))

    assert out.shape == (B, n_class)
    np.testing.assert_allclose(np.asarray(out), np.asarray(ref),
                               rtol=1e-2, atol=1e-2)
    print("KERNEL_OK")
</pallas_src>

<mosaic_0001>
module attributes {stable_mosaic.version = 11 : i64} {
  func.func @_csnet_fused_kernel(%arg0: i32, %arg1: memref<1x8x256xf32, #tpu.memory_space<vmem>>, %arg2: memref<24x17xf32, #tpu.memory_space<vmem>>, %arg3: memref<1x2x24x24xf32, #tpu.memory_space<vmem>>) attributes {dimension_semantics = [#tpu.dimension_semantics<parallel>], iteration_bounds = array<i64: 2>, scalar_prefetch = 0 : i64, scratch_operands = 0 : i64, tpu.core_type = #tpu.core_type<tc>, window_params = [{transform_indices = @transform_0, window_bounds = array<i64: 1, 8, 256>}, {pipeline_mode = #tpu.pipeline_mode<synchronous>, transform_indices = @transform_1, window_bounds = array<i64: 24, 17>}, {transform_indices = @transform_2, window_bounds = array<i64: 1, 2, 24, 24>}]} {
    %c0 = arith.constant 0 : index
    %c0_0 = arith.constant 0 : index
    %c0_1 = arith.constant 0 : index
    %0 = vector.load %arg1[%c0, %c0_0, %c0_1] : memref<1x8x256xf32, #tpu.memory_space<vmem>>, vector<1x8x256xf32>
    %1 = vector.shape_cast %0 : vector<1x8x256xf32> to vector<8x256xf32>
    %c0_2 = arith.constant 0 : index
    %c0_3 = arith.constant 0 : index
    %2 = vector.load %arg2[%c0_2, %c0_3] : memref<24x17xf32, #tpu.memory_space<vmem>>, vector<24x17xf32>
    %3 = vector.extract_strided_slice %2 {offsets = [0, 0], sizes = [24, 8], strides = [1, 1]} : vector<24x17xf32> to vector<24x8xf32>
    %4 = vector.extract_strided_slice %2 {offsets = [0, 8], sizes = [24, 1], strides = [1, 1]} : vector<24x17xf32> to vector<24x1xf32>
    %5 = vector.extract_strided_slice %2 {offsets = [0, 9], sizes = [24, 7], strides = [1, 1]} : vector<24x17xf32> to vector<24x7xf32>
    %6 = vector.extract_strided_slice %2 {offsets = [0, 16], sizes = [24, 1], strides = [1, 1]} : vector<24x17xf32> to vector<24x1xf32>
    %7 = tpu.iota {dimensions = array<i32: 1>} : vector<1x256xi32>
    %c128_i32 = arith.constant 128 : i32
    %c0_i32 = arith.constant 0 : i32
    %8 = arith.cmpi eq, %c128_i32, %c0_i32 : i32
    %c1_i32 = arith.constant 1 : i32
    %9 = arith.select %8, %c1_i32, %c128_i32 : i32
    %10 = vector.broadcast %9 : i32 to vector<1x256xi32>
    %11 = arith.remsi %7, %10 : vector<1x256xi32>
    %c0_i32_4 = arith.constant 0 : i32
    %12 = vector.broadcast %c0_i32_4 : i32 to vector<1x256xi32>
    %13 = arith.cmpi ne, %11, %12 : vector<1x256xi32>
    %c0_i32_5 = arith.constant 0 : i32
    %14 = vector.broadcast %c0_i32_5 : i32 to vector<1x256xi32>
    %15 = arith.cmpi slt, %11, %14 : vector<1x256xi32>
    %c0_i32_6 = arith.constant 0 : i32
    %16 = arith.cmpi slt, %9, %c0_i32_6 : i32
    %17 = vector.broadcast %16 : i1 to vector<1x256xi1>
    %18 = vector.broadcast %17 : vector<1x256xi1> to vector<1x256xi1>
    %19 = arith.xori %15, %18 : vector<1x256xi1>
    %20 = arith.andi %19, %13 : vector<1x256xi1>
    %21 = vector.broadcast %9 : i32 to vector<1x256xi32>
    %22 = arith.addi %11, %21 : vector<1x256xi32>
    %23 = arith.select %20, %22, %11 : vector<1x256xi1>, vector<1x256xi32>
    %c64_i32 = arith.constant 64 : i32
    %24 = vector.broadcast %c64_i32 : i32 to vector<1x256xi32>
    %25 = arith.cmpi slt, %23, %24 : vector<1x256xi32>
    %26 = arith.extui %25 : vector<1x256xi1> to vector<1x256xi32>
    %27 = arith.sitofp %26 : vector<1x256xi32> to vector<1x256xf32>
    %cst = arith.constant dense<0.000000e+00> : vector<24x256xf32>
    %28 = tpu.matmul %3, %1, %cst {dimension_numbers = #tpu.dot_dimension_numbers<[1], [0], [0], [1], [0, 0, 1, 1], [], []>} : vector<24x8xf32>, vector<8x256xf32>, vector<24x256xf32> -> vector<24x256xf32>
    %29 = vector.broadcast %4 : vector<24x1xf32> to vector<24x256xf32>
    %30 = arith.addf %28, %29 : vector<24x256xf32>
    %31 = vector.broadcast %27 : vector<1x256xf32> to vector<24x256xf32>
    %32 = arith.mulf %30, %31 : vector<24x256xf32>
    %cst_7 = arith.constant 0.000000e+00 : f32
    %33 = vector.broadcast %cst_7 : f32 to vector<24x256xf32>
    %c3_i32 = arith.constant 3 : i32
    %34 = tpu.dynamic_rotate %32 by %c3_i32 dim 1 : vector<24x256xf32>, i32 -> vector<24x256xf32>
    %35 = vector.extract_strided_slice %5 {offsets = [0, 0], sizes = [24, 1], strides = [1, 1]} : vector<24x7xf32> to vector<24x1xf32>
    %36 = vector.broadcast %35 : vector<24x1xf32> to vector<24x256xf32>
    %37 = arith.mulf %36, %34 : vector<24x256xf32>
    %38 = arith.addf %33, %37 : vector<24x256xf32>
    %c2_i32 = arith.constant 2 : i32
    %39 = tpu.dynamic_rotate %32 by %c2_i32 dim 1 : vector<24x256xf32>, i32 -> vector<24x256xf32>
    %40 = vector.extract_strided_slice %5 {offsets = [0, 1], sizes = [24, 1], strides = [1, 1]} : vector<24x7xf32> to vector<24x1xf32>
    %41 = vector.broadcast %40 : vector<24x1xf32> to vector<24x256xf32>
    %42 = arith.mulf %41, %39 : vector<24x256xf32>
    %43 = arith.addf %38, %42 : vector<24x256xf32>
    %c1_i32_8 = arith.constant 1 : i32
    %44 = tpu.dynamic_rotate %32 by %c1_i32_8 dim 1 : vector<24x256xf32>, i32 -> vector<24x256xf32>
    %45 = vector.extract_strided_slice %5 {offsets = [0, 2], sizes = [24, 1], strides = [1, 1]} : vector<24x7xf32> to vector<24x1xf32>
    %46 = vector.broadcast %45 : vector<24x1xf32> to vector<24x256xf32>
    %47 = arith.mulf %46, %44 : vector<24x256xf32>
    %48 = arith.addf %43, %47 : vector<24x256xf32>
    %49 = vector.extract_strided_slice %5 {offsets = [0, 3], sizes = [24, 1], strides = [1, 1]} : vector<24x7xf32> to vector<24x1xf32>
    %50 = vector.broadcast %49 : vector<24x1xf32> to vector<24x256xf32>
    %51 = arith.mulf %50, %32 : vector<24x256xf32>
    %52 = arith.addf %48, %51 : vector<24x256xf32>
    %c255_i32 = arith.constant 255 : i32
    %53 = tpu.dynamic_rotate %32 by %c255_i32 dim 1 : vector<24x256xf32>, i32 -> vector<24x256xf32>
    %54 = vector.extract_strided_slice %5 {offsets = [0, 4], sizes = [24, 1], strides = [1, 1]} : vector<24x7xf32> to vector<24x1xf32>
    %55 = vector.broadcast %54 : vector<24x1xf32> to vector<24x256xf32>
    %56 = arith.mulf %55, %53 : vector<24x256xf32>
    %57 = arith.addf %52, %56 : vector<24x256xf32>
    %c254_i32 = arith.constant 254 : i32
    %58 = tpu.dynamic_rotate %32 by %c254_i32 dim 1 : vector<24x256xf32>, i32 -> vector<24x256xf32>
    %59 = vector.extract_strided_slice %5 {offsets = [0, 5], sizes = [24, 1], strides = [1, 1]} : vector<24x7xf32> to vector<24x1xf32>
    %60 = vector.broadcast %59 : vector<24x1xf32> to vector<24x256xf32>
    %61 = arith.mulf %60, %58 : vector<24x256xf32>
    %62 = arith.addf %57, %61 : vector<24x256xf32>
    %c253_i32 = arith.constant 253 : i32
    %63 = tpu.dynamic_rotate %32 by %c253_i32 dim 1 : vector<24x256xf32>, i32 -> vector<24x256xf32>
    %64 = vector.extract_strided_slice %5 {offsets = [0, 6], sizes = [24, 1], strides = [1, 1]} : vector<24x7xf32> to vector<24x1xf32>
    %65 = vector.broadcast %64 : vector<24x1xf32> to vector<24x256xf32>
    %66 = arith.mulf %65, %63 : vector<24x256xf32>
    %67 = arith.addf %62, %66 : vector<24x256xf32>
    %68 = vector.broadcast %6 : vector<24x1xf32> to vector<24x256xf32>
    %69 = arith.addf %67, %68 : vector<24x256xf32>
    %70 = vector.broadcast %27 : vector<1x256xf32> to vector<24x256xf32>
    %71 = arith.mulf %69, %70 : vector<24x256xf32>
    %72 = vector.extract_strided_slice %71 {offsets = [0, 0], sizes = [24, 128], strides = [1, 1]} : vector<24x256xf32> to vector<24x128xf32>
    %cst_9 = arith.constant dense<0.000000e+00> : vector<24x24xf32>
    %73 = tpu.matmul %72, %72, %cst_9 {dimension_numbers = #tpu.dot_dimension_numbers<[1], [1], [0], [0], [0, 0, 1, 0], [], []>} : vector<24x128xf32>, vector<24x128xf32>, vector<24x24xf32> -> vector<24x24xf32>
    %c0_10 = arith.constant 0 : index
    %c0_11 = arith.constant 0 : index
    %c0_12 = arith.constant 0 : index
    %c0_13 = arith.constant 0 : index
    %74 = vector.load %arg3[%c0_10, %c0_11, %c0_12, %c0_13] : memref<1x2x24x24xf32, #tpu.memory_space<vmem>>, vector<1x1x24x24xf32>
    %75 = vector.shape_cast %74 : vector<1x1x24x24xf32> to vector<24x24xf32>
    %76 = vector.shape_cast %73 : vector<24x24xf32> to vector<1x1x24x24xf32>
    tpu.vector_store %arg3[%c0_10, %c0_11, %c0_12, %c0_13], %76 {strides = array<i32>} : memref<1x2x24x24xf32, #tpu.memory_space<vmem>>, vector<1x1x24x24xf32>,
    %77 = vector.extract_strided_slice %71 {offsets = [0, 128], sizes = [24, 128], strides = [1, 1]} : vector<24x256xf32> to vector<24x128xf32>
    %cst_14 = arith.constant dense<0.000000e+00> : vector<24x24xf32>
    %78 = tpu.matmul %77, %77, %cst_14 {dimension_numbers = #tpu.dot_dimension_numbers<[1], [1], [0], [0], [0, 0, 1, 0], [], []>} : vector<24x128xf32>, vector<24x128xf32>, vector<24x24xf32> -> vector<24x24xf32>
    %c0_15 = arith.constant 0 : index
    %c1 = arith.constant 1 : index
    %c0_16 = arith.constant 0 : index
    %c0_17 = arith.constant 0 : index
    %79 = vector.load %arg3[%c0_15, %c1, %c0_16, %c0_17] : memref<1x2x24x24xf32, #tpu.memory_space<vmem>>, vector<1x1x24x24xf32>
    %80 = vector.shape_cast %79 : vector<1x1x24x24xf32> to vector<24x24xf32>
    %81 = vector.shape_cast %78 : vector<24x24xf32> to vector<1x1x24x24xf32>
    tpu.vector_store %arg3[%c0_15, %c1, %c0_16, %c0_17], %81 {strides = array<i32>} : memref<1x2x24x24xf32, #tpu.memory_space<vmem>>, vector<1x1x24x24xf32>,
    return
  }
  func.func @transform_0(%arg0: i32) -> (i32, i32, i32) {
    %c0_i32 = arith.constant 0 : i32
    %c0_i32_0 = arith.constant 0 : i32
    %c0_i32_1 = arith.constant 0 : i32
    return %arg0, %c0_i32, %c0_i32_0 : i32, i32, i32
  }
  func.func @transform_1(%arg0: i32) -> (i32, i32) {
    %c0_i32 = arith.constant 0 : i32
    %c0_i32_0 = arith.constant 0 : i32
    %c0_i32_1 = arith.constant 0 : i32
    return %c0_i32, %c0_i32_0 : i32, i32
  }
  func.func @transform_2(%arg0: i32) -> (i32, i32, i32, i32) {
    %c0_i32 = arith.constant 0 : i32
    %c0_i32_0 = arith.constant 0 : i32
    %c0_i32_1 = arith.constant 0 : i32
    %c0_i32_2 = arith.constant 0 : i32
    return %arg0, %c0_i32, %c0_i32_0, %c0_i32_1 : i32, i32, i32, i32
  }
}

</mosaic_0001>

<llo_original>
// kernel: tpu_custom_call.1
$region0: #{tpu_custom_call.1}
  #allocation0 [shape = 'u32[]', space=smem, size = 0x4, offset = 0x4, fixed_abs, tag = 'smem constant byte address 0x4 - core index']
  #allocation1 [shape = 'u32[144,128]{1,0:T(1,128)}', space=vmem, size = 0x12000, scoped, tag = 'internal scratch']
  %s0 = inlined_call_operand.hbm [shape: f32[2,8,256], index: 0, kind: input, shape index: {}]
  %s1 = inlined_call_operand.hbm [shape: f32[24,17], index: 1, kind: input, shape index: {}]
  %s2 = inlined_call_operand.hbm [shape: f32[2,2,24,24], index: 2, kind: output, shape index: {}]
  %s3 = sld [smem:[#allocation0]]
  $region49: #{tpu_custom_call.1} parent=0
    _
  %s5 = ssub.s32 1, %s3
  %s6 = scalar_select 0, %s5, %s3
  $region1: #{tpu_custom_call.1} parent=0
    #allocation2 [shape = 'u8[16384]{0}', space=vmem, size = 0x4000, scoped, tag = 'input window, operand 0']
    #allocation3 [shape = 's32[2]{0}', space=sflag, size = 0x8, scoped, tag = 'scoped memory for tpu_custom_call.1']
    #allocation4 [shape = 's32[2]{0}', space=sflag, size = 0x8, scoped, tag = 'scoped memory for tpu_custom_call.1']
    #allocation5 [shape = 'u8[12288]{0}', space=vmem, size = 0x3000, scoped, tag = 'input window, operand 1, single buffered']
    #allocation6 [shape = 's32[1]{0}', space=sflag, size = 0x4, scoped, tag = 'scoped memory for tpu_custom_call.1']
    #allocation7 [shape = 'u8[49152]{0}', space=vmem, size = 0xc000, scoped, tag = 'output window, operand 0']
    %7 = vsyncpa [#allocation3], 0
    %s8 = scalar_lea.sflag [#allocation3], 1
    %9 = vsyncpa %s8, 0
    %10 = vsyncpa [#allocation6], 0
    %11 = vsyncpa [#allocation4], 0
    %s12 = scalar_lea.sflag [#allocation4], 1
    %13 = vsyncpa %s12, 0
    loop: start=0, step=1, limit=4
    $region2: #{tpu_custom_call.1} parent=1 // loop_pre_header
      _
    $region3: #{tpu_custom_call.1} parent=1 // loop_header
      %s15 = sphi 0, %s19
      %p16 = scmp.ge.s32.totalorder %s15, 4
      %s25 = sphi 0, %s27
      %s28 = sphi 0, %s25
      %s29 = sphi 0, %s28
      %s45 = sphi 0, %s29
      %s49 = sphi 0, %s49
      %s51 = sphi 0, %s49
      %s52 = sphi 0, %s51
      %s66 = sphi 0, %s52
      %s72 = sphi 0, %s74
      %s75 = sphi 0, %s72
      %s76 = sphi 0, %s75
      %s92 = sphi 0, %s76
    $region4: #{tpu_custom_call.1} parent=1 // loop_header_branch
      %18 = sbr.rel (%p16) target = $region8
    $region5: #{tpu_custom_call.1} parent=1 // loop_body
      %s20 = ssub.s32 %s15, 1
      %s21 = ssub.s32 %s15, 2
      %s22 = sadd.s32 %s15, 1
      %s23 = ssub.s32 %s15, %s22
      %p24 = scmp.eq.s32.totalorder %s23, 0
      %s26 = sadd.s32 %s25, 1
      %s27 = scalar_select %p24, %s25, %s26
      %p30 = pneg %p24
      %p31 = scmp.eq.s32.totalorder %s15, 1
      %p32 = por %p30, %p31
      %p33 = scmp.ne.s32.totalorder %s25, %s28
      %p34 = scmp.eq.s32.totalorder %s15, 0
      %p35 = por %p33, %p34
      %p36 = scmp.ne.s32.totalorder %s25, %s28
      %p37 = scmp.eq.s32.totalorder %s20, 1
      %p38 = por %p36, %p37
      %p39 = scmp.ne.s32.totalorder %s28, %s29
      %p40 = scmp.eq.s32.totalorder %s20, 0
      %p41 = por %p39, %p40
      %p42 = scmp.ne.s32.totalorder %s28, %s29
      %p43 = scmp.eq.s32.totalorder %s21, 1
      %p44 = por %p42, %p43
      %p46 = scmp.ne.s32.totalorder %s29, %s45
      %p47 = scmp.eq.s32.totalorder %s21, 0
      %p48 = por %p46, %p47
      %s50 = sadd.s32 %s49, 1
      %p53 = scmp.eq.s32.totalorder %s15, 1
      %p54 = scmp.ne.s32.totalorder %s49, %s51
      %p55 = scmp.eq.s32.totalorder %s15, 0
      %p56 = por %p54, %p55
      %p57 = scmp.ne.s32.totalorder %s49, %s51
      %p58 = scmp.eq.s32.totalorder %s20, 1
      %p59 = por %p57, %p58
      %p60 = scmp.ne.s32.totalorder %s51, %s52
      %p61 = scmp.eq.s32.totalorder %s20, 0
      %p62 = por %p60, %p61
      %p63 = scmp.ne.s32.totalorder %s51, %s52
      %p64 = scmp.eq.s32.totalorder %s21, 1
      %p65 = por %p63, %p64
      %p67 = scmp.ne.s32.totalorder %s52, %s66
      %p68 = scmp.eq.s32.totalorder %s21, 0
      %p69 = por %p67, %p68
      %s70 = ssub.s32 %s15, %s22
      %p71 = scmp.eq.s32.totalorder %s70, 0
      %s73 = sadd.s32 %s72, 1
      %s74 = scalar_select %p71, %s72, %s73
      %p77 = pneg %p71
      %p78 = scmp.eq.s32.totalorder %s15, 1
      %p79 = por %p77, %p78
      %p80 = scmp.ne.s32.totalorder %s72, %s75
      %p81 = scmp.eq.s32.totalorder %s15, 0
      %p82 = por %p80, %p81
      %p83 = scmp.ne.s32.totalorder %s72, %s75
      %p84 = scmp.eq.s32.totalorder %s20, 1
      %p85 = por %p83, %p84
      %p86 = scmp.ne.s32.totalorder %s75, %s76
      %p87 = scmp.eq.s32.totalorder %s20, 0
      %p88 = por %p86, %p87
      %p89 = scmp.ne.s32.totalorder %s75, %s76
      %p90 = scmp.eq.s32.totalorder %s21, 1
      %p91 = por %p89, %p90
      %p93 = scmp.ne.s32.totalorder %s76, %s92
      %p94 = scmp.eq.s32.totalorder %s21, 0
      %p95 = por %p93, %p94
      %p96 = scmp.le.s32.totalorder 1, %s15
      %p97 = scmp.lt.s32.totalorder %s15, 3
      %p98 = pnand %p96, %p97
      %p99 = pneg %p98
      // Predicated region
      $region9: #{tpu_custom_call.1} parent=5 // pred_check
        _
      $region10: #{tpu_custom_call.1} parent=5 // pred_check_branch
        %101 = sbr.rel (%p98) target = $region12
      $region11: #{tpu_custom_call.1} parent=5 // pred_region
        %s102 = ssub.s32 %s15, 1
        // Predicated region
        $region13: #{tpu_custom_call.1} parent=11 // pred_check
          %p103 = pneg %p62
        $region14: #{tpu_custom_call.1} parent=11 // pred_check_branch
          %105 = sbr.rel (%p103) target = $region16
        $region15: #{tpu_custom_call.1} parent=11 // pred_region
          %s107 = ssub.s32 384, 384
          %108 = vsyncadd [#allocation6], %s107
          %s109 = sshll.u32 [#allocation5], 4
          %s110 = int_to_ptr.vmem [resolvable:$true] %s109
          %115 = dma.hbm_to_vmem [thread:$0]  %s1, 384, %s110, [#allocation6], 128, 128, 8
        $region16: #{tpu_custom_call.1} parent=11 // pred_fallthru
          _
      $region12: #{tpu_custom_call.1} parent=5 // pred_fallthru
        _
      %p116 = scmp.lt.s32.totalorder %s15, 2
      // Predicated region
      $region17: #{tpu_custom_call.1} parent=5 // pred_check
        %p117 = pneg %p116
      $region18: #{tpu_custom_call.1} parent=5 // pred_check_branch
        %119 = sbr.rel (%p117) target = $region20
      $region19: #{tpu_custom_call.1} parent=5 // pred_region
        // Predicated region
        $region21: #{tpu_custom_call.1} parent=19 // pred_check
          %p120 = pneg %p35
        $region22: #{tpu_custom_call.1} parent=19 // pred_check_branch
          %122 = sbr.rel (%p120) target = $region24
        $region23: #{tpu_custom_call.1} parent=19 // pred_region
          %s123 = sand.u32 %s25, 1
          %s124 = scalar_lea.sflag [#allocation3], %s123
          %s125 = sand.u32 %s25, 1
          %s126 = smul.addr %s125, 16
          %s127 = scalar_lea.vmem [#allocation2], %s126
          %s129 = ssub.s32 256, 256
          %130 = vsyncadd %s124, %s129
          %s131 = smul.addr %s15, 2
          %s132 = smul.addr %s131, 128
          %s133 = scalar_lea.hbm %s0, %s132
          %s135 = sshll.u32 %s127, 4
          %s136 = int_to_ptr.vmem [resolvable:$true] %s135
          %138 = dma.hbm_to_vmem [thread:$0]  %s133, 256, %s136, %s124
        $region24: #{tpu_custom_call.1} parent=19 // pred_fallthru
          _
      $region20: #{tpu_custom_call.1} parent=5 // pred_fallthru
        _
      %p139 = scmp.le.s32.totalorder 1, %s15
      %p140 = scmp.lt.s32.totalorder %s15, 3
      %p141 = pnand %p139, %p140
      %p142 = pneg %p141
      // Predicated region
      $region25: #{tpu_custom_call.1} parent=5 // pred_check
        _
      $region26: #{tpu_custom_call.1} parent=5 // pred_check_branch
        %144 = sbr.rel (%p141) target = $region28
      $region27: #{tpu_custom_call.1} parent=5 // pred_region
        %s145 = ssub.s32 %s15, 1
        %s146 = sand.u32 %s28, 1
        %s147 = scalar_lea.sflag [#allocation3], %s146
        %s148 = sand.u32 %s28, 1
        %s149 = smul.addr %s148, 16
        %s150 = scalar_lea.vmem [#allocation2], %s149
        // Predicated region
        $region29: #{tpu_custom_call.1} parent=27 // pred_check
          %p151 = pneg %p41
        $region30: #{tpu_custom_call.1} parent=27 // pred_check_branch
          %153 = sbr.rel (%p151) target = $region32
        $region31: #{tpu_custom_call.1} parent=27 // pred_region
          %154 = dma.done %s147, 256
        $region32: #{tpu_custom_call.1} parent=27 // pred_fallthru
          _
        // Predicated region
        $region33: #{tpu_custom_call.1} parent=27 // pred_check
          %p155 = pneg %p62
        $region34: #{tpu_custom_call.1} parent=27 // pred_check_branch
          %157 = sbr.rel (%p155) target = $region36
        $region35: #{tpu_custom_call.1} parent=27 // pred_region
          %158 = dma.done [#allocation6], 384
        $region36: #{tpu_custom_call.1} parent=27 // pred_fallthru
          _
        %s159 = sand.u32 %s28, 1
        %s160 = scalar_lea.sflag [#allocation3], %s159
        %s161 = sand.u32 %s28, 1
        %s162 = smul.addr %s161, 16
        %s163 = scalar_lea.vmem [#allocation2], %s162
        %p164 = pneg %p41
        %p165 = pneg %p38
        %p166 = pneg %p62
        %p167 = pneg %p59
        %p168 = pneg %p88
        %p169 = pneg %p85
        %s170 = sand.u32 %s75, 1
        %s171 = scalar_lea.sflag [#allocation4], %s170
        %s172 = sand.u32 %s75, 1
        %s173 = smul.addr %s172, 48
        %s174 = scalar_lea.vmem [#allocation7], %s173
        %v175 = vld [vmem:[%s150] sm:$0xff]
        %v176 = vld [vmem:[%s150 + $0x8] sm:$0xff]
        %v177 = vld [vmem:[#allocation5] sm:$0xff]
        %v178 = vld [vmem:[#allocation5 + $0x8] sm:$0xff]
        %v179 = vld [vmem:[#allocation5 + $0x10] sm:$0xff]
        %v180 = vlaneseq
        %v181 = vand.u32 %v180, 127
        %v182 = vadd.s32 %v181, 128
        %vm183 = vcmp.lt.s32.totalorder %v181, 0
        %v184 = vsub.s32 0, %v181
        %v185 = vsel %vm183, %v184, %v181
        %v186 = vshrl.u32 %v185, 7
        %v187 = vand.u32 %v185, 127
        %v188 = vsub.s32 0, %v187
        %v189 = vsel %vm183, %v188, %v187
        %vm190 = vcmp.lt.s32.totalorder %v182, 0
        %v191 = vsub.s32 0, %v182
        %v192 = vsel %vm190, %v191, %v182
        %v193 = vshrl.u32 %v192, 7
        %v194 = vand.u32 %v192, 127
        %v195 = vsub.s32 0, %v194
        %v196 = vsel %vm190, %v195, %v194
        %vm197 = vcmp.ne.s32.totalorder %v189, 0
        %vm198 = vcmp.ne.s32.totalorder %v196, 0
        %vm199 = vcmp.lt.s32.totalorder %v189, 0
        %vm200 = vcmp.lt.s32.totalorder %v196, 0
        %vm201 = vmand %vm199, %vm197
        %vm202 = vmand %vm200, %vm198
        %v203 = vadd.s32 %v189, 128
        %v204 = vadd.s32 %v196, 128
        %v205 = vsel %vm201, %v203, %v189
        %v206 = vsel %vm202, %v204, %v196
        %vm207 = vcmp.lt.s32.totalorder %v205, 64
        %vm208 = vcmp.lt.s32.totalorder %v206, 64
        %v209 = vsel %vm207, 1, 0
        %v210 = vsel %vm208, 1, 0
        %v211 = vcvt.s32.f32 %v209
        %v212 = vcvt.s32.f32 %v210
        %214 = vset.pattern.permute.xlu0 8
        %215 = vperm.xlu0 %214, %v177
        %v216 = vpop.permute.xlu0 %215
        %219 = vset.pattern.permute.xlu0 8
        %220 = vperm.xlu0 %219, %v178
        %v221 = vpop.permute.xlu0 %220
        %224 = vset.pattern.permute.xlu0 8
        %225 = vperm.xlu0 %224, %v179
        %v226 = vpop.permute.xlu0 %225
        %vm228 = vcmask 64512
        %v229 = vsel %vm228, %v177, 0
        %v231 = vsel %vm228, %v178, 0
        %v233 = vsel %vm228, %v179, 0
        %235 = vmatprep.subr.mxu0 0.0
        %236 = vmatpush1.msra.mxu0 0.0
        %237 = vmatprep.subr.mxu0 0.0
        %238 = vmatpush1.msra.mxu0 0.0
        %239 = vmatprep.subr.mxu0 0.0
        %240 = vmatpush1.msra.mxu0 0.0
        %241 = vmatprep.subr.mxu0 0.0
        %242 = vmatpush1.msra.mxu0 0.0
        %243 = vmatprep.subr.mxu0 0.0
        %244 = vmatpush1.msra.mxu0 0.0
        %245 = vmatprep.subr.mxu0 0.0
        %246 = vmatpush1.msra.mxu0 0.0
        %247 = vmatprep.subr.mxu0 0.0
        %248 = vmatpush1.msra.mxu0 0.0
        %249 = vmatprep.subr.mxu0 0.0
        %250 = vmatpush1.msra.mxu0 0.0
        %251 = vmatprep.subr.mxu0 0.0
        %252 = vmatpush1.msra.mxu0 0.0
        %253 = vmatprep.subr.mxu0 0.0
        %254 = vmatpush1.msra.mxu0 0.0
        %255 = vmatprep.subr.mxu0 0.0
        %256 = vmatpush1.msra.mxu0 0.0
        %257 = vmatprep.subr.mxu0 0.0
        %258 = vmatpush1.msra.mxu0 0.0
        %259 = vmatprep.subr.mxu0 0.0
        %260 = vmatpush1.msra.mxu0 0.0
        %261 = vmatprep.subr.mxu0 0.0
        %262 = vmatpush1.msra.mxu0 0.0
        %263 = vmatprep.subr.mxu0 0.0
        %264 = vmatpush1.msra.mxu0 0.0
        %265 = vmatprep.subr.mxu0 %v176
        %266 = vmatpush1.msra.mxu0 %v175
        %267 = vmatprep.subr.mxu0 0.0
        %268 = vmatpush2.msra.mxu0 0.0
        %269 = vmatprep.subr.mxu0 0.0
        %270 = vmatpush2.msra.mxu0 0.0
        %271 = vmatprep.subr.mxu0 0.0
        %272 = vmatpush2.msra.mxu0 0.0
        %273 = vmatprep.subr.mxu0 0.0
        %274 = vmatpush2.msra.mxu0 0.0
        %275 = vmatprep.subr.mxu0 0.0
        %276 = vmatpush2.msra.mxu0 0.0
        %277 = vmatprep.subr.mxu0 0.0
        %278 = vmatpush2.msra.mxu0 0.0
        %279 = vmatprep.subr.mxu0 0.0
        %280 = vmatpush2.msra.mxu0 0.0
        %281 = vmatprep.subr.mxu0 0.0
        %282 = vmatpush2.msra.mxu0 0.0
        %283 = vmatprep.subr.mxu0 0.0
        %284 = vmatpush2.msra.mxu0 0.0
        %285 = vmatprep.subr.mxu0 0.0
        %286 = vmatpush2.msra.mxu0 0.0
        %287 = vmatprep.subr.mxu0 0.0
        %288 = vmatpush2.msra.mxu0 0.0
        %289 = vmatprep.subr.mxu0 0.0
        %290 = vmatpush2.msra.mxu0 0.0
        %291 = vmatprep.subr.mxu0 0.0
        %292 = vmatpush2.msra.mxu0 0.0
        %293 = vmatprep.subr.mxu0 0.0
        %294 = vmatpush2.msra.mxu0 0.0
        %295 = vmatprep.subr.mxu0 0.0
        %296 = vmatpush2.msra.mxu0 0.0
        %297 = vmatprep.subr.mxu0 0.0
        %298 = vmatpush2.msra.mxu0 0.0
        %299 = vmatprep.mubr.f32.mxu0 0.0
        %300 = vmatmul.mubr.f32.gmra.mxu0 %v229
        %v301 = vpop.f32.mrf.mxu0
        %v302 = vadd.f32 %v216, %v301
        %v303 = vpop.f32.mrf.mxu0
        %v304 = vadd.f32 %v216, %v303
        %305 = vmatprep.mubr.f32.mxu0 0.0
        %306 = vmatmul.mubr.f32.gmra.mxu0 %v231
        %v307 = vpop.f32.mrf.mxu0
        %v308 = vadd.f32 %v221, %v307
        %v309 = vpop.f32.mrf.mxu0
        %v310 = vadd.f32 %v221, %v309
        %311 = vmatprep.mubr.f32.mxu0 0.0
        %312 = vmatmul.mubr.f32.gmra.mxu0 %v233
        %v313 = vpop.f32.mrf.mxu0
        %v314 = vadd.f32 %v226, %v313
        %v315 = vpop.f32.mrf.mxu0
        %v316 = vadd.f32 %v226, %v315
        %317 = vdwg.mxu0
        %v318 = vmul.f32 %v302, %v211
        %v319 = vmul.f32 %v304, %v212
        %v320 = vmul.f32 %v308, %v211
        %v321 = vmul.f32 %v310, %v212
        %v322 = vmul.f32 %v314, %v211
        %v323 = vmul.f32 %v316, %v212
        %324 = vrot.lane.b32.xlu0 %v318, 3
        %v325 = vpop.permute.xlu0 %324
        %326 = vrot.lane.b32.xlu0 %v320, 3
        %v327 = vpop.permute.xlu0 %326
        %328 = vrot.lane.b32.xlu0 %v322, 3
        %v329 = vpop.permute.xlu0 %328
        %330 = vrot.lane.b32.xlu0 %v319, 3
        %v331 = vpop.permute.xlu0 %330
        %332 = vrot.lane.b32.xlu0 %v321, 3
        %v333 = vpop.permute.xlu0 %332
        %334 = vrot.lane.b32.xlu0 %v323, 3
        %v335 = vpop.permute.xlu0 %334
        %vm336 = vcmp.lt.s32.totalorder %v181, 3
        %v337 = vsel %vm336, %v325, %v331
        %v338 = vsel %vm336, %v327, %v333
        %v339 = vsel %vm336, %v329, %v335
        %v340 = vsel %vm336, %v331, %v325
        %v341 = vsel %vm336, %v333, %v327
        %v342 = vsel %vm336, %v335, %v329
        %343 = vset.pattern.permute.xlu0 9
        %344 = vperm.xlu0 %343, %v177
        %v345 = vpop.permute.xlu0 %344
        %347 = vset.pattern.permute.xlu0 9
        %348 = vperm.xlu0 %347, %v178
        %v349 = vpop.permute.xlu0 %348
        %351 = vset.pattern.permute.xlu0 9
        %352 = vperm.xlu0 %351, %v179
        %v353 = vpop.permute.xlu0 %352
        %v355 = vmul.f32 %v345, %v340
        %v356 = vmul.f32 %v345, %v337
        %v357 = vmul.f32 %v349, %v341
        %v358 = vmul.f32 %v349, %v338
        %v359 = vmul.f32 %v353, %v342
        %v360 = vmul.f32 %v353, %v339
        %v361 = vadd.f32 %v355, 0.0
        %v362 = vadd.f32 %v356, 0.0
        %v363 = vadd.f32 %v357, 0.0
        %v364 = vadd.f32 %v358, 0.0
        %v365 = vadd.f32 %v359, 0.0
        %v366 = vadd.f32 %v360, 0.0
        %367 = vrot.lane.b32.xlu0 %v318, 2
        %v368 = vpop.permute.xlu0 %367
        %369 = vrot.lane.b32.xlu0 %v320, 2
        %v370 = vpop.permute.xlu0 %369
        %371 = vrot.lane.b32.xlu0 %v322, 2
        %v372 = vpop.permute.xlu0 %371
        %373 = vrot.lane.b32.xlu0 %v319, 2
        %v374 = vpop.permute.xlu0 %373
        %375 = vrot.lane.b32.xlu0 %v321, 2
        %v376 = vpop.permute.xlu0 %375
        %377 = vrot.lane.b32.xlu0 %v323, 2
        %v378 = vpop.permute.xlu0 %377
        %vm379 = vcmp.lt.s32.totalorder %v181, 2
        %v380 = vsel %vm379, %v368, %v374
        %v381 = vsel %vm379, %v370, %v376
        %v382 = vsel %vm379, %v372, %v378
        %v383 = vsel %vm379, %v374, %v368
        %v384 = vsel %vm379, %v376, %v370
        %v385 = vsel %vm379, %v378, %v372
        %386 = vset.pattern.permute.xlu0 10
        %387 = vperm.xlu0 %386, %v177
        %v388 = vpop.permute.xlu0 %387
        %390 = vset.pattern.permute.xlu0 10
        %391 = vperm.xlu0 %390, %v178
        %v392 = vpop.permute.xlu0 %391
        %394 = vset.pattern.permute.xlu0 10
        %395 = vperm.xlu0 %394, %v179
        %v396 = vpop.permute.xlu0 %395
        %v398 = vmul.f32 %v388, %v383
        %v399 = vmul.f32 %v388, %v380
        %v400 = vmul.f32 %v392, %v384
        %v401 = vmul.f32 %v392, %v381
        %v402 = vmul.f32 %v396, %v385
        %v403 = vmul.f32 %v396, %v382
        %v404 = vadd.f32 %v361, %v398
        %v405 = vadd.f32 %v362, %v399
        %v406 = vadd.f32 %v363, %v400
        %v407 = vadd.f32 %v364, %v401
        %v408 = vadd.f32 %v365, %v402
        %v409 = vadd.f32 %v366, %v403
        %410 = vrot.lane.b32.xlu0 %v318, 1
        %v411 = vpop.permute.xlu0 %410
        %412 = vrot.lane.b32.xlu0 %v320, 1
        %v413 = vpop.permute.xlu0 %412
        %414 = vrot.lane.b32.xlu0 %v322, 1
        %v415 = vpop.permute.xlu0 %414
        %416 = vrot.lane.b32.xlu0 %v319, 1
        %v417 = vpop.permute.xlu0 %416
        %418 = vrot.lane.b32.xlu0 %v321, 1
        %v419 = vpop.permute.xlu0 %418
        %420 = vrot.lane.b32.xlu0 %v323, 1
        %v421 = vpop.permute.xlu0 %420
        %vm422 = vcmp.lt.s32.totalorder %v181, 1
        %v423 = vsel %vm422, %v411, %v417
        %v424 = vsel %vm422, %v413, %v419
        %v425 = vsel %vm422, %v415, %v421
        %v426 = vsel %vm422, %v417, %v411
        %v427 = vsel %vm422, %v419, %v413
        %v428 = vsel %vm422, %v421, %v415
        %429 = vset.pattern.permute.xlu0 11
        %430 = vperm.xlu0 %429, %v177
        %v431 = vpop.permute.xlu0 %430
        %433 = vset.pattern.permute.xlu0 11
        %434 = vperm.xlu0 %433, %v178
        %v435 = vpop.permute.xlu0 %434
        %437 = vset.pattern.permute.xlu0 11
        %438 = vperm.xlu0 %437, %v179
        %v439 = vpop.permute.xlu0 %438
        %v441 = vmul.f32 %v431, %v426
        %v442 = vmul.f32 %v431, %v423
        %v443 = vmul.f32 %v435, %v427
        %v444 = vmul.f32 %v435, %v424
        %v445 = vmul.f32 %v439, %v428
        %v446 = vmul.f32 %v439, %v425
        %v447 = vadd.f32 %v404, %v441
        %v448 = vadd.f32 %v405, %v442
        %v449 = vadd.f32 %v406, %v443
        %v450 = vadd.f32 %v407, %v444
        %v451 = vadd.f32 %v408, %v445
        %v452 = vadd.f32 %v409, %v446
        %453 = vset.pattern.permute.xlu0 12
        %454 = vperm.xlu0 %453, %v177
        %v455 = vpop.permute.xlu0 %454
        %457 = vset.pattern.permute.xlu0 12
        %458 = vperm.xlu0 %457, %v178
        %v459 = vpop.permute.xlu0 %458
        %461 = vset.pattern.permute.xlu0 12
        %462 = vperm.xlu0 %461, %v179
        %v463 = vpop.permute.xlu0 %462
        %v465 = vmul.f32 %v455, %v318
        %v466 = vmul.f32 %v455, %v319
        %v467 = vmul.f32 %v459, %v320
        %v468 = vmul.f32 %v459, %v321
        %v469 = vmul.f32 %v463, %v322
        %v470 = vmul.f32 %v463, %v323
        %v471 = vadd.f32 %v447, %v465
        %v472 = vadd.f32 %v448, %v466
        %v473 = vadd.f32 %v449, %v467
        %v474 = vadd.f32 %v450, %v468
        %v475 = vadd.f32 %v451, %v469
        %v476 = vadd.f32 %v452, %v470
        %477 = vrot.lane.b32.xlu0 %v318, 127
        %v478 = vpop.permute.xlu0 %477
        %479 = vrot.lane.b32.xlu0 %v320, 127
        %v480 = vpop.permute.xlu0 %479
        %481 = vrot.lane.b32.xlu0 %v322, 127
        %v482 = vpop.permute.xlu0 %481
        %483 = vrot.lane.b32.xlu0 %v319, 127
        %v484 = vpop.permute.xlu0 %483
        %485 = vrot.lane.b32.xlu0 %v321, 127
        %v486 = vpop.permute.xlu0 %485
        %487 = vrot.lane.b32.xlu0 %v323, 127
        %v488 = vpop.permute.xlu0 %487
        %vm489 = vcmp.lt.s32.totalorder %v181, 127
        %v490 = vsel %vm489, %v478, %v484
        %v491 = vsel %vm489, %v480, %v486
        %v492 = vsel %vm489, %v482, %v488
        %v493 = vsel %vm489, %v484, %v478
        %v494 = vsel %vm489, %v486, %v480
        %v495 = vsel %vm489, %v488, %v482
        %496 = vset.pattern.permute.xlu0 13
        %497 = vperm.xlu0 %496, %v177
        %v498 = vpop.permute.xlu0 %497
        %500 = vset.pattern.permute.xlu0 13
        %501 = vperm.xlu0 %500, %v178
        %v502 = vpop.permute.xlu0 %501
        %504 = vset.pattern.permute.xlu0 13
        %505 = vperm.xlu0 %504, %v179
        %v506 = vpop.permute.xlu0 %505
        %v508 = vmul.f32 %v498, %v490
        %v509 = vmul.f32 %v498, %v493
        %v510 = vmul.f32 %v502, %v491
        %v511 = vmul.f32 %v502, %v494
        %v512 = vmul.f32 %v506, %v492
        %v513 = vmul.f32 %v506, %v495
        %v514 = vadd.f32 %v471, %v508
        %v515 = vadd.f32 %v472, %v509
        %v516 = vadd.f32 %v473, %v510
        %v517 = vadd.f32 %v474, %v511
        %v518 = vadd.f32 %v475, %v512
        %v519 = vadd.f32 %v476, %v513
        %520 = vrot.lane.b32.xlu0 %v318, 126
        %v521 = vpop.permute.xlu0 %520
        %522 = vrot.lane.b32.xlu0 %v320, 126
        %v523 = vpop.permute.xlu0 %522
        %524 = vrot.lane.b32.xlu0 %v322, 126
        %v525 = vpop.permute.xlu0 %524
        %526 = vrot.lane.b32.xlu0 %v319, 126
        %v527 = vpop.permute.xlu0 %526
        %528 = vrot.lane.b32.xlu0 %v321, 126
        %v529 = vpop.permute.xlu0 %528
        %530 = vrot.lane.b32.xlu0 %v323, 126
        %v531 = vpop.permute.xlu0 %530
        %vm532 = vcmp.lt.s32.totalorder %v181, 126
        %v533 = vsel %vm532, %v521, %v527
        %v534 = vsel %vm532, %v523, %v529
        %v535 = vsel %vm532, %v525, %v531
        %v536 = vsel %vm532, %v527, %v521
        %v537 = vsel %vm532, %v529, %v523
        %v538 = vsel %vm532, %v531, %v525
        %539 = vset.pattern.permute.xlu0 14
        %540 = vperm.xlu0 %539, %v177
        %v541 = vpop.permute.xlu0 %540
        %543 = vset.pattern.permute.xlu0 14
        %544 = vperm.xlu0 %543, %v178
        %v545 = vpop.permute.xlu0 %544
        %547 = vset.pattern.permute.xlu0 14
        %548 = vperm.xlu0 %547, %v179
        %v549 = vpop.permute.xlu0 %548
        %v551 = vmul.f32 %v541, %v533
        %v552 = vmul.f32 %v541, %v536
        %v553 = vmul.f32 %v545, %v534
        %v554 = vmul.f32 %v545, %v537
        %v555 = vmul.f32 %v549, %v535
        %v556 = vmul.f32 %v549, %v538
        %v557 = vadd.f32 %v514, %v551
        %v558 = vadd.f32 %v515, %v552
        %v559 = vadd.f32 %v516, %v553
        %v560 = vadd.f32 %v517, %v554
        %v561 = vadd.f32 %v518, %v555
        %v562 = vadd.f32 %v519, %v556
        %563 = vrot.lane.b32.xlu0 %v318, 125
        %v564 = vpop.permute.xlu0 %563
        %565 = vrot.lane.b32.xlu0 %v320, 125
        %v566 = vpop.permute.xlu0 %565
        %567 = vrot.lane.b32.xlu0 %v322, 125
        %v568 = vpop.permute.xlu0 %567
        %569 = vrot.lane.b32.xlu0 %v319, 125
        %v570 = vpop.permute.xlu0 %569
        %571 = vrot.lane.b32.xlu0 %v321, 125
        %v572 = vpop.permute.xlu0 %571
        %573 = vrot.lane.b32.xlu0 %v323, 125
        %v574 = vpop.permute.xlu0 %573
        %vm575 = vcmp.lt.s32.totalorder %v181, 125
        %v576 = vsel %vm575, %v564, %v570
        %v577 = vsel %vm575, %v566, %v572
        %v578 = vsel %vm575, %v568, %v574
        %v579 = vsel %vm575, %v570, %v564
        %v580 = vsel %vm575, %v572, %v566
        %v581 = vsel %vm575, %v574, %v568
        %582 = vset.pattern.permute.xlu0 15
        %583 = vperm.xlu0 %582, %v177
        %v584 = vpop.permute.xlu0 %583
        %586 = vset.pattern.permute.xlu0 15
        %587 = vperm.xlu0 %586, %v178
        %v588 = vpop.permute.xlu0 %587
        %590 = vset.pattern.permute.xlu0 15
        %591 = vperm.xlu0 %590, %v179
        %v592 = vpop.permute.xlu0 %591
        %v594 = vmul.f32 %v584, %v576
        %v595 = vmul.f32 %v584, %v579
        %v596 = vmul.f32 %v588, %v577
        %v597 = vmul.f32 %v588, %v580
        %v598 = vmul.f32 %v592, %v578
        %v599 = vmul.f32 %v592, %v581
        %v600 = vadd.f32 %v557, %v594
        %v601 = vadd.f32 %v558, %v595
        %v602 = vadd.f32 %v559, %v596
        %v603 = vadd.f32 %v560, %v597
        %v604 = vadd.f32 %v561, %v598
        %v605 = vadd.f32 %v562, %v599
        %606 = vset.pattern.permute.xlu0 16
        %607 = vperm.xlu0 %606, %v177
        %v608 = vpop.permute.xlu0 %607
        %610 = vset.pattern.permute.xlu0 16
        %611 = vperm.xlu0 %610, %v178
        %v612 = vpop.permute.xlu0 %611
        %614 = vset.pattern.permute.xlu0 16
        %615 = vperm.xlu0 %614, %v179
        %v616 = vpop.permute.xlu0 %615
        %v618 = vadd.f32 %v600, %v608
        %v619 = vadd.f32 %v601, %v608
        %v620 = vadd.f32 %v602, %v612
        %v621 = vadd.f32 %v603, %v612
        %v622 = vadd.f32 %v604, %v616
        %v623 = vadd.f32 %v605, %v616
        %v624 = vmul.f32 %v618, %v211
        %v625 = vmul.f32 %v619, %v212
        %v626 = vmul.f32 %v620, %v211
        %v627 = vmul.f32 %v621, %v212
        %v628 = vmul.f32 %v622, %v211
        %v629 = vmul.f32 %v623, %v212
        %630 = vmatprep.subr.mxu0 0.0
        %631 = vmatpush1.xpose.msra.mxu0 0.0
        %632 = vmatprep.subr.mxu0 0.0
        %633 = vmatpush1.xpose.msra.mxu0 0.0
        %634 = vmatprep.subr.mxu0 0.0
        %635 = vmatpush1.xpose.msra.mxu0 0.0
        %636 = vmatprep.subr.mxu0 0.0
        %637 = vmatpush1.xpose.msra.mxu0 0.0
        %638 = vmatprep.subr.mxu0 0.0
        %639 = vmatpush1.xpose.msra.mxu0 0.0
        %640 = vmatprep.subr.mxu0 0.0
        %641 = vmatpush1.xpose.msra.mxu0 0.0
        %642 = vmatprep.subr.mxu0 0.0
        %643 = vmatpush1.xpose.msra.mxu0 0.0
        %644 = vmatprep.subr.mxu0 0.0
        %645 = vmatpush1.xpose.msra.mxu0 0.0
        %646 = vmatprep.subr.mxu0 0.0
        %647 = vmatpush1.xpose.msra.mxu0 0.0
        %648 = vmatprep.subr.mxu0 0.0
        %649 = vmatpush1.xpose.msra.mxu0 0.0
        %650 = vmatprep.subr.mxu0 0.0
        %651 = vmatpush1.xpose.msra.mxu0 0.0
        %652 = vmatprep.subr.mxu0 0.0
        %653 = vmatpush1.xpose.msra.mxu0 0.0
        %654 = vmatprep.subr.mxu0 0.0
        %655 = vmatpush1.xpose.msra.mxu0 0.0
        %656 = vmatprep.subr.mxu0 0.0
        %657 = vmatpush1.xpose.msra.mxu0 %v628
        %658 = vmatprep.subr.mxu0 0.0
        %659 = vmatpush1.xpose.msra.mxu0 %v626
        %660 = vmatprep.subr.mxu0 0.0
        %661 = vmatpush1.xpose.msra.mxu0 %v624
        %662 = vmatprep.subr.mxu0 0.0
        %663 = vmatpush2.xpose.msra.mxu0 0.0
        %664 = vmatprep.subr.mxu0 0.0
        %665 = vmatpush2.xpose.msra.mxu0 0.0
        %666 = vmatprep.subr.mxu0 0.0
        %667 = vmatpush2.xpose.msra.mxu0 0.0
        %668 = vmatprep.subr.mxu0 0.0
        %669 = vmatpush2.xpose.msra.mxu0 0.0
        %670 = vmatprep.subr.mxu0 0.0
        %671 = vmatpush2.xpose.msra.mxu0 0.0
        %672 = vmatprep.subr.mxu0 0.0
        %673 = vmatpush2.xpose.msra.mxu0 0.0
        %674 = vmatprep.subr.mxu0 0.0
        %675 = vmatpush2.xpose.msra.mxu0 0.0
        %676 = vmatprep.subr.mxu0 0.0
        %677 = vmatpush2.xpose.msra.mxu0 0.0
        %678 = vmatprep.subr.mxu0 0.0
        %679 = vmatpush2.xpose.msra.mxu0 0.0
        %680 = vmatprep.subr.mxu0 0.0
        %681 = vmatpush2.xpose.msra.mxu0 0.0
        %682 = vmatprep.subr.mxu0 0.0
        %683 = vmatpush2.xpose.msra.mxu0 0.0
        %684 = vmatprep.subr.mxu0 0.0
        %685 = vmatpush2.xpose.msra.mxu0 0.0
        %686 = vmatprep.subr.mxu0 0.0
        %687 = vmatpush2.xpose.msra.mxu0 0.0
        %688 = vmatprep.subr.mxu0 0.0
        %689 = vmatpush2.xpose.msra.mxu0 0.0
        %690 = vmatprep.subr.mxu0 0.0
        %691 = vmatpush2.xpose.msra.mxu0 0.0
        %692 = vmatprep.subr.mxu0 0.0
        %693 = vmatpush2.xpose.msra.mxu0 0.0
        %694 = vmatprep.mubr.f32.mxu0 0.0
        %695 = vmatmul.mubr.f32.gmra.mxu0 %v624
        %v696 = vpop.f32.mrf.mxu0
        %v697 = vadd.f32 0.0, %v696
        %v698 = vpop.f32.mrf.mxu0
        %699 = vmatprep.mubr.f32.mxu0 0.0
        %700 = vmatmul.mubr.f32.gmra.mxu0 %v626
        %v701 = vpop.f32.mrf.mxu0
        %v702 = vadd.f32 0.0, %v701
        %v703 = vpop.f32.mrf.mxu0
        %704 = vmatprep.mubr.f32.mxu0 0.0
        %705 = vmatmul.mubr.f32.gmra.mxu0 %v628
        %v706 = vpop.f32.mrf.mxu0
        %v707 = vadd.f32 0.0, %v706
        %v708 = vpop.f32.mrf.mxu0
        %709 = vdwg.mxu0
        %vm710 = vcmask 195584
        %711 = vst.msk [vmem:[%s174] sm:$0xff] %vm710, %v697
        %712 = vst.msk [vmem:[%s174 + $0x8] sm:$0xff] %vm710, %v702
        %713 = vst.msk [vmem:[%s174 + $0x10] sm:$0xff] %vm710, %v707
        %714 = vmatprep.subr.mxu0 0.0
        %715 = vmatpush1.xpose.msra.mxu0 0.0
        %716 = vmatprep.subr.mxu0 0.0
        %717 = vmatpush1.xpose.msra.mxu0 0.0
        %718 = vmatprep.subr.mxu0 0.0
        %719 = vmatpush1.xpose.msra.mxu0 0.0
        %720 = vmatprep.subr.mxu0 0.0
        %721 = vmatpush1.xpose.msra.mxu0 0.0
        %722 = vmatprep.subr.mxu0 0.0
        %723 = vmatpush1.xpose.msra.mxu0 0.0
        %724 = vmatprep.subr.mxu0 0.0
        %725 = vmatpush1.xpose.msra.mxu0 0.0
        %726 = vmatprep.subr.mxu0 0.0
        %727 = vmatpush1.xpose.msra.mxu0 0.0
        %728 = vmatprep.subr.mxu0 0.0
        %729 = vmatpush1.xpose.msra.mxu0 0.0
        %730 = vmatprep.subr.mxu0 0.0
        %731 = vmatpush1.xpose.msra.mxu0 0.0
        %732 = vmatprep.subr.mxu0 0.0
        %733 = vmatpush1.xpose.msra.mxu0 0.0
        %734 = vmatprep.subr.mxu0 0.0
        %735 = vmatpush1.xpose.msra.mxu0 0.0
        %736 = vmatprep.subr.mxu0 0.0
        %737 = vmatpush1.xpose.msra.mxu0 0.0
        %738 = vmatprep.subr.mxu0 0.0
        %739 = vmatpush1.xpose.msra.mxu0 0.0
        %740 = vmatprep.subr.mxu0 0.0
        %741 = vmatpush1.xpose.msra.mxu0 %v629
        %742 = vmatprep.subr.mxu0 0.0
        %743 = vmatpush1.xpose.msra.mxu0 %v627
        %744 = vmatprep.subr.mxu0 0.0
        %745 = vmatpush1.xpose.msra.mxu0 %v625
        %746 = vmatprep.subr.mxu0 0.0
        %747 = vmatpush2.xpose.msra.mxu0 0.0
        %748 = vmatprep.subr.mxu0 0.0
        %749 = vmatpush2.xpose.msra.mxu0 0.0
        %750 = vmatprep.subr.mxu0 0.0
        %751 = vmatpush2.xpose.msra.mxu0 0.0
        %752 = vmatprep.subr.mxu0 0.0
        %753 = vmatpush2.xpose.msra.mxu0 0.0
        %754 = vmatprep.subr.mxu0 0.0
        %755 = vmatpush2.xpose.msra.mxu0 0.0
        %756 = vmatprep.subr.mxu0 0.0
        %757 = vmatpush2.xpose.msra.mxu0 0.0
        %758 = vmatprep.subr.mxu0 0.0
        %759 = vmatpush2.xpose.msra.mxu0 0.0
        %760 = vmatprep.subr.mxu0 0.0
        %761 = vmatpush2.xpose.msra.mxu0 0.0
        %762 = vmatprep.subr.mxu0 0.0
        %763 = vmatpush2.xpose.msra.mxu0 0.0
        %764 = vmatprep.subr.mxu0 0.0
        %765 = vmatpush2.xpose.msra.mxu0 0.0
        %766 = vmatprep.subr.mxu0 0.0
        %767 = vmatpush2.xpose.msra.mxu0 0.0
        %768 = vmatprep.subr.mxu0 0.0
        %769 = vmatpush2.xpose.msra.mxu0 0.0
        %770 = vmatprep.subr.mxu0 0.0
        %771 = vmatpush2.xpose.msra.mxu0 0.0
        %772 = vmatprep.subr.mxu0 0.0
        %773 = vmatpush2.xpose.msra.mxu0 0.0
        %774 = vmatprep.subr.mxu0 0.0
        %775 = vmatpush2.xpose.msra.mxu0 0.0
        %776 = vmatprep.subr.mxu0 0.0
        %777 = vmatpush2.xpose.msra.mxu0 0.0
        %778 = vmatprep.mubr.f32.mxu0 0.0
        %779 = vmatmul.mubr.f32.gmra.mxu0 %v625
        %v780 = vpop.f32.mrf.mxu0
        %v781 = vadd.f32 0.0, %v780
        %v782 = vpop.f32.mrf.mxu0
        %783 = vmatprep.mubr.f32.mxu0 0.0
        %784 = vmatmul.mubr.f32.gmra.mxu0 %v627
        %v785 = vpop.f32.mrf.mxu0
        %v786 = vadd.f32 0.0, %v785
        %v787 = vpop.f32.mrf.mxu0
        %788 = vmatprep.mubr.f32.mxu0 0.0
        %789 = vmatmul.mubr.f32.gmra.mxu0 %v629
        %v790 = vpop.f32.mrf.mxu0
        %v791 = vadd.f32 0.0, %v790
        %v792 = vpop.f32.mrf.mxu0
        %793 = vdwg.mxu0
        %s794 = scalar_lea.vmem %s174, 24 [#allocation7]
        %795 = vst.msk [vmem:[%s794] sm:$0xff] %vm710, %v781
        %796 = vst.msk [vmem:[%s794 + $0x8] sm:$0xff] %vm710, %v786
        %797 = vst.msk [vmem:[%s794 + $0x10] sm:$0xff] %vm710, %v791
        %s798 = sand.u32 %s75, 1
        %s799 = scalar_lea.sflag [#allocation4], %s798
        %s800 = sand.u32 %s75, 1
        %s801 = smul.addr %s800, 48
        %s802 = scalar_lea.vmem [#allocation7], %s801
        // Predicated region
        $region37: #{tpu_custom_call.1} parent=27 // pred_check
          %p803 = pneg %p85
        $region38: #{tpu_custom_call.1} parent=27 // pred_check_branch
          %805 = sbr.rel (%p803) target = $region40
        $region39: #{tpu_custom_call.1} parent=27 // pred_region
          %s807 = ssub.s32 768, 768
          %808 = vsyncadd %s799, %s807
          %s809 = smul.addr %s20, 6
          %s810 = smul.addr %s809, 128
          %s811 = scalar_lea.hbm %s2, %s810
          %s812 = sshll.u32 %s802, 4
          %s813 = int_to_ptr.vmem [resolvable:$true] %s812
          %818 = dma.vmem_to_hbm [thread:$0]  %s813, 768, %s811, %s799, 128, 128, 8
        $region40: #{tpu_custom_call.1} parent=27 // pred_fallthru
          _
      $region28: #{tpu_custom_call.1} parent=5 // pred_fallthru
        _
      %p819 = scmp.le.s32.totalorder 2, %s15
      // Predicated region
      $region41: #{tpu_custom_call.1} parent=5 // pred_check
        %p820 = pneg %p819
      $region42: #{tpu_custom_call.1} parent=5 // pred_check_branch
        %822 = sbr.rel (%p820) target = $region44
      $region43: #{tpu_custom_call.1} parent=5 // pred_region
        %s823 = ssub.s32 %s15, 2
        // Predicated region
        $region45: #{tpu_custom_call.1} parent=43 // pred_check
          %p824 = pneg %p91
        $region46: #{tpu_custom_call.1} parent=43 // pred_check_branch
          %826 = sbr.rel (%p824) target = $region48
        $region47: #{tpu_custom_call.1} parent=43 // pred_region
          %s827 = sand.u32 %s76, 1
          %s828 = scalar_lea.sflag [#allocation4], %s827
          %s829 = sand.u32 %s76, 1
          %s830 = smul.addr %s829, 48
          %s831 = scalar_lea.vmem [#allocation7], %s830
          %832 = dma.done %s828, 768
        $region48: #{tpu_custom_call.1} parent=43 // pred_fallthru
          _
      $region44: #{tpu_custom_call.1} parent=5 // pred_fallthru
        _
    $region6: #{tpu_custom_call.1} parent=1 // loop_footer
      %s19 = sadd.s32 1, %s15
    $region7: #{tpu_custom_call.1} parent=1 // loop_footer_branch
      %14 = sbr.rel target = $region3
    $region8: #{tpu_custom_call.1} parent=1 // loop_exit
      _
    %833 = vsyncpa [#allocation3], 1
    %s834 = scalar_lea.sflag [#allocation3], 1
    %835 = vsyncpa %s834, 1
    %836 = vsyncpa [#allocation6], 1
    %837 = vsyncpa [#allocation4], 1
    %s838 = scalar_lea.sflag [#allocation4], 1
    %839 = vsyncpa %s838, 1

</llo_original>
